<compile_context>
chip_gen: v6e
topology: v6e:2x2x1
jax: 0.10.0
libtpu: 0.0.40
codegen_flags: <defaults>
</compile_context>

<pallas_src>
from dataclasses import dataclass
from functools import partial
from typing import Dict, List, Optional, Union

import jax
import jax.numpy as jnp
from jax import lax
from jax.experimental import pallas as pl
from jax.experimental.pallas import tpu as pltpu


# ----------------------------- feature descriptors -----------------------------
@dataclass(frozen=True)
class SparseFeature:
    name: str
    vocab_size: int
    embed_dim: int
    shared_with: Optional[str] = None


@dataclass(frozen=True)
class DenseFeature:
    name: str


# ----------------------------- small helpers -----------------------------------
def _round_up(x: int, m: int) -> int:
    return ((x + m - 1) // m) * m


def _physical_vmem_bytes() -> int:
    """Physical VMEM of the current generation; conservative (v7x) fallback."""
    try:
        info = pltpu.get_tpu_info()
        return int(getattr(info, "vmem_capacity_bytes", 64 << 20))
    except Exception:
        return 64 << 20


def _pick_tile_b(batch: int, max_tile: int = 512) -> int:
    """Batch-tile: multiple of 8, large (amortize ~0.35us/step overhead), but
    keep >= 2 grid tiles when the batch allows it so v7x's two TensorCores both
    get work under dimension_semantics=("parallel",)."""
    half = _round_up(pl.cdiv(batch, 2), 8)
    return max(8, min(max_tile, half))


# One-hot-MXU gather cost scales with vocab size; above this we fall back to
# the HBM row-DMA path even if the table would fit VMEM.
# TODO(synk): replace with a true VMEM-resident dynamic row gather
# (tpu.dynamic_gather) for mid-size vocabs that fit VMEM but exceed this cap.
_ONE_HOT_MAX_VOCAB = 4096

# Cap on ids scalar-prefetched into SMEM per pallas_call on the HBM path
# (1-D SMEM arrays pad to the next power of two; keep them <= ~128 KiB).
_MAX_PREFETCH_IDS = 32768


# ============================ fast path: VMEM-resident table ====================
def _vmem_onehot_gather_kernel(ids_ref, table_ref, out_ref, *,
                               n_feat: int, embed_dim: int, fd_pad: int):
    """ids_ref : (tile_b, n_feat) int32 VMEM block (global row ids)
       table_ref: (sum_V, D) stacked table, VMEM-resident (same block every step)
       out_ref : (tile_b, fd_pad) output block, fd_pad a multiple of 128."""
    tile_b = ids_ref.shape[0]
    vocab = table_ref.shape[0]
    ids = ids_ref[...]                              # (tile_b, n_feat) int32
    table = table_ref[...]                          # (sum_V, D)

    cols = []
    for f in range(n_feat):                         # n_feat is small & static
        idf = ids[:, f:f + 1]                       # (tile_b, 1)
        iota = lax.broadcasted_iota(jnp.int32, (tile_b, vocab), 1)
        one_hot = (idf == iota).astype(table.dtype)            # (tile_b, sum_V)
        emb = jnp.dot(one_hot, table,
                      preferred_element_type=jnp.float32)      # MXU row gather
        cols.append(emb.astype(out_ref.dtype))
    pad = fd_pad - n_feat * embed_dim
    if pad:
        cols.append(jnp.zeros((tile_b, pad), out_ref.dtype))
    # single full-block (lane-dense, unmasked) store
    out_ref[...] = jnp.concatenate(cols, axis=1)


def _vmem_path(ids2d: jax.Array, table: jax.Array, tile_b: int) -> jax.Array:
    B, F = ids2d.shape
    V, D = table.shape
    num_tiles = pl.cdiv(B, tile_b)
    b_pad = num_tiles * tile_b
    fd_pad = _round_up(F * D, 128)

    ids_p = jnp.pad(ids2d.astype(jnp.int32), ((0, b_pad - B), (0, 0)))

    itemsize = table.dtype.itemsize
    table_bytes = V * D * itemsize
    need = (table_bytes + 2 * tile_b * fd_pad * itemsize
            + 2 * tile_b * F * 4 + (2 << 20))
    phys = _physical_vmem_bytes()
    vmem_limit = int(min(max(need + (4 << 20), 32 << 20), phys - (4 << 20)))

    cost = pl.CostEstimate(
        flops=int(2 * b_pad * F * V * D),
        transcendentals=0,
        bytes_accessed=int(table_bytes + ids_p.size * 4 + b_pad * F * D * itemsize),
    )

    kernel = partial(_vmem_onehot_gather_kernel,
                     n_feat=F, embed_dim=D, fd_pad=fd_pad)
    out = pl.pallas_call(
        kernel,
        out_shape=jax.ShapeDtypeStruct((b_pad, fd_pad), table.dtype),
        grid=(num_tiles,),
        in_specs=[
            pl.BlockSpec((tile_b, F), lambda i: (i, 0)),   # per-tile ids (VMEM)
            pl.BlockSpec((V, D), lambda i: (0, 0)),        # table resident in VMEM
        ],
        out_specs=pl.BlockSpec((tile_b, fd_pad), lambda i: (i, 0)),
        compiler_params=pltpu.CompilerParams(
            dimension_semantics=("parallel",),
            vmem_limit_bytes=vmem_limit,
        ),
        cost_estimate=cost,
    )(ids_p, table)
    return out[:B, : F * D]


# ============================ fallback: HBM row-DMA gather ======================
def _hbm_dma_gather_kernel(ids_ref, table_ref, out_ref, row_sems, *,
                           n_feat: int, embed_dim: int, tile_b: int, batch: int):
    """ids_ref : (chunk*F,) int32 in SMEM (scalar-prefetched)
       table_ref: (sum_V, D) table left in HBM (memory_space=pl.ANY)
       out_ref : (tile_b, fd_pad) VMEM output block
       row_sems: (tile_b,) DMA semaphores, one per row (all F copies share it)."""
    bt = pl.program_id(0)
    base = bt * (tile_b * n_feat)
    # guard the padded tail: only issue DMAs for real rows of the last tile
    valid = jnp.minimum(tile_b, batch - bt * tile_b)

    def start_row(r, carry):
        # all scalar SMEM reads + DMA starts happen before any wait
        for f in range(n_feat):                       # small static feature loop
            rid = ids_ref[base + r * n_feat + f]
            pltpu.make_async_copy(
                table_ref.at[rid],                                  # (D,) HBM row
                out_ref.at[r, pl.ds(f * embed_dim, embed_dim)],     # (D,) VMEM slot
                row_sems.at[r],
            ).start()
        return carry

    def wait_row(r, carry):
        for f in range(n_feat):
            # same-shaped descriptor, only used to wait on row r's semaphore
            pltpu.make_async_copy(
                table_ref.at[0],
                out_ref.at[r, pl.ds(f * embed_dim, embed_dim)],
                row_sems.at[r],
            ).wait()
        return carry

    lax.fori_loop(0, valid, start_row, 0)
    lax.fori_loop(0, valid, wait_row, 0)


def _hbm_single_call(ids2d: jax.Array, table: jax.Array, tile_b: int) -> jax.Array:
    B, F = ids2d.shape
    V, D = table.shape
    num_tiles = pl.cdiv(B, tile_b)
    b_pad = num_tiles * tile_b
    fd_pad = _round_up(F * D, 128)        # lane-dense output block (pad lanes sliced off)

    ids_flat = jnp.pad(ids2d.astype(jnp.int32).reshape(-1), (0, (b_pad - B) * F))

    itemsize = table.dtype.itemsize
    cost = pl.CostEstimate(
        flops=0, transcendentals=0,
        bytes_accessed=int(2 * B * F * D * itemsize + ids_flat.size * 4),
    )
    kernel = partial(_hbm_dma_gather_kernel,
                     n_feat=F, embed_dim=D, tile_b=tile_b, batch=B)
    out = pl.pallas_call(
        kernel,
        out_shape=jax.ShapeDtypeStruct((b_pad, fd_pad), table.dtype),
        grid_spec=pltpu.PrefetchScalarGridSpec(
            num_scalar_prefetch=1,                       # ids -> SMEM
            grid=(num_tiles,),
            in_specs=[pl.BlockSpec(memory_space=pl.ANY)],  # table stays in HBM
            out_specs=pl.BlockSpec((tile_b, fd_pad), lambda i, ids: (i, 0)),
            scratch_shapes=[pltpu.SemaphoreType.DMA((tile_b,))],
        ),
        compiler_params=pltpu.CompilerParams(dimension_semantics=("parallel",)),
        cost_estimate=cost,
    )(ids_flat, table)
    return out[:B, : F * D]


def _hbm_path(ids2d: jax.Array, table: jax.Array, tile_b: int) -> jax.Array:
    B, F = ids2d.shape
    tile_b = min(tile_b, 256)             # cap per-step DMA-descriptor fan-out
    rows_per_call = max(tile_b, (_MAX_PREFETCH_IDS // max(F, 1)) // tile_b * tile_b)
    if B <= rows_per_call:
        return _hbm_single_call(ids2d, table, tile_b)
    parts = [_hbm_single_call(ids2d[s:s + rows_per_call], table, tile_b)
             for s in range(0, B, rows_per_call)]
    return jnp.concatenate(parts, axis=0)


# ============================ public fused lookup ===============================
def fused_embedding_lookup(gather_ids: jax.Array, table: jax.Array, *,
                           max_tile_b: int = 512,
                           force_path: Optional[str] = None) -> jax.Array:
    """Gather rows of `table` (sum_V, D) at `gather_ids` (B, F) -> (B, F*D)."""
    B, F = gather_ids.shape
    V, D = table.shape
    tile_b = _pick_tile_b(B, max_tile_b)

    if force_path == "hbm":
        return _hbm_path(gather_ids, table, tile_b)
    if force_path == "vmem":
        return _vmem_path(gather_ids, table, tile_b)

    table_bytes = V * D * table.dtype.itemsize
    vmem_budget = _physical_vmem_bytes() // 2   # ~32 MiB on v7x, ~64 MiB on v5e/v6e
    if table_bytes <= vmem_budget and V <= _ONE_HOT_MAX_VOCAB:
        return _vmem_path(gather_ids, table, tile_b)
    return _hbm_path(gather_ids, table, tile_b)


# ----------------------------- EmbeddingLayer (JAX) -----------------------------
class EmbeddingLayer:
    """JAX/Pallas port of the PyTorch EmbeddingLayer (forward semantics preserved)."""

    def __init__(self, features: List[Union[SparseFeature, DenseFeature]], key: jax.Array):
        self.features = features
        self.embed_dict: Dict[str, jax.Array] = {}
        self.n_dense = 0
        table_order: List[str] = []
        for fea in features:
            if fea.name in self.embed_dict:
                continue
            if isinstance(fea, SparseFeature) and fea.shared_with is None:
                key, sub = jax.random.split(key)
                # nn.Embedding default init: N(0, 1)
                self.embed_dict[fea.name] = jax.random.normal(
                    sub, (fea.vocab_size, fea.embed_dim), dtype=jnp.float32)
                table_order.append(fea.name)
            elif isinstance(fea, DenseFeature):
                self.n_dense += 1

        # Stack all unique tables once (explicit order list -> row offsets) so a
        # single fused gather kernel serves every sparse feature of a forward.
        self._row_offset: Dict[str, int] = {}
        self._embed_dim: Optional[int] = None
        tables, off = [], 0
        for name in table_order:
            tbl = self.embed_dict[name]
            if self._embed_dim is None:
                self._embed_dim = tbl.shape[1]
            assert tbl.shape[1] == self._embed_dim, (
                "all sparse embed_dims must match (required by the concat in forward)")
            self._row_offset[name] = off
            off += tbl.shape[0]
            tables.append(tbl)
        self.stacked_table = jnp.concatenate(tables, axis=0) if tables else None

    def _sparse_gather_ids(self, x: Dict[str, jax.Array], sparse_feas) -> jax.Array:
        id_cols = []
        for fea in sparse_feas:
            tbl_name = fea.name if fea.shared_with is None else fea.shared_with
            tbl = self.embed_dict[tbl_name]
            # clamp (matches jnp.take; PyTorch nn.Embedding raises on OOB ids)
            idx = jnp.clip(x[fea.name].astype(jnp.int32), 0, tbl.shape[0] - 1)
            id_cols.append(idx + self._row_offset[tbl_name])
        return jnp.stack(id_cols, axis=1)                   # (B, F)

    def __call__(self, x: Dict[str, jax.Array], features, squeeze_dim: bool = False):
        sparse_feas = [fea for fea in features if isinstance(fea, SparseFeature)]
        dense_values = [x[fea.name].astype(jnp.float32)[:, None]   # unsqueeze(1)
                        for fea in features if isinstance(fea, DenseFeature)]

        sparse_exists = len(sparse_feas) > 0
        dense_exists = len(dense_values) > 0
        sparse_flat = sparse_emb = None

        if sparse_exists:
            D = self._embed_dim
            gather_ids = self._sparse_gather_ids(x, sparse_feas)     # (B, F)
            B, F = gather_ids.shape
            sparse_flat = fused_embedding_lookup(gather_ids, self.stacked_table)  # (B, F*D)
            sparse_emb = sparse_flat.reshape(B, F, D)                # (B, F, D)

        if dense_exists:
            dense_values = jnp.concatenate(dense_values, axis=1)     # (B, n_dense)

        if squeeze_dim:
            if dense_exists and not sparse_exists:
                return dense_values
            elif sparse_exists and not dense_exists:
                return sparse_flat
            elif sparse_exists and dense_exists:
                return jnp.concatenate((sparse_flat, dense_values), axis=1)
            raise ValueError("The input features can not be empty")
        if sparse_exists:
            return (sparse_emb, dense_values if dense_exists else None)
        raise ValueError(
            "If keep the original shape:[batch_size, num_features, embed_dim], "
            "expected SparseFeatures in feature list, got %s" % (features,))


# ----------------------------- demo / sanity check -----------------------------
if __name__ == "__main__":
    B = 16
    EMBED_DIM = 16

    features = [
        SparseFeature("user_id", vocab_size=32, embed_dim=EMBED_DIM),
        SparseFeature("item_id", vocab_size=48, embed_dim=EMBED_DIM),
        SparseFeature("target_item", vocab_size=48, embed_dim=EMBED_DIM, shared_with="item_id"),
        DenseFeature("age"),
        DenseFeature("price"),
    ]

    key = jax.random.PRNGKey(0)
    k_params, k_u, k_i, k_t, k_a, k_p = jax.random.split(key, 6)

    layer = EmbeddingLayer(features, k_params)

    x = {
        "user_id": jax.random.randint(k_u, (B,), 0, 32, dtype=jnp.int32),
        "item_id": jax.random.randint(k_i, (B,), 0, 48, dtype=jnp.int32),
        "target_item": jax.random.randint(k_t, (B,), 0, 48, dtype=jnp.int32),
        "age": jax.random.uniform(k_a, (B,), dtype=jnp.float32),
        "price": jax.random.uniform(k_p, (B,), dtype=jnp.float32),
    }

    # squeeze_dim=True path: (B, n_sparse*D + n_dense)   [VMEM fast path]
    out_flat = jax.block_until_ready(layer(x, features, squeeze_dim=True))
    assert out_flat.shape == (B, 3 * EMBED_DIM + 2), out_flat.shape

    # squeeze_dim=False path: ((B, n_sparse, D), (B, n_dense))
    sparse_out, dense_out = layer(x, features, squeeze_dim=False)
    sparse_out = jax.block_until_ready(sparse_out)
    assert sparse_out.shape == (B, 3, EMBED_DIM)
    assert dense_out.shape == (B, 2)

    # reference check against plain-JAX gather
    ref_user = jnp.take(layer.embed_dict["user_id"], x["user_id"], axis=0)
    ref_item = jnp.take(layer.embed_dict["item_id"], x["item_id"], axis=0)
    ref_tgt = jnp.take(layer.embed_dict["item_id"], x["target_item"], axis=0)
    ref_sparse = jnp.stack([ref_user, ref_item, ref_tgt], axis=1)
    assert jnp.allclose(sparse_out, ref_sparse, atol=1e-6), "embedding lookup mismatch"
    ref_flat = jnp.concatenate(
        [ref_sparse.reshape(B, -1), jnp.stack([x["age"], x["price"]], axis=1)], axis=1
    )
    assert jnp.allclose(out_flat, ref_flat, atol=1e-6), "squeeze_dim output mismatch"

    # Also exercise the large-table fallback (manual HBM row-DMA gather) path.
    sparse_feas = [f for f in features if isinstance(f, SparseFeature)]
    gather_ids = layer._sparse_gather_ids(x, sparse_feas)
    hbm_flat = jax.block_until_ready(
        fused_embedding_lookup(gather_ids, layer.stacked_table, force_path="hbm"))
    assert hbm_flat.shape == (B, 3 * EMBED_DIM)
    assert jnp.allclose(hbm_flat.reshape(B, 3, EMBED_DIM), ref_sparse, atol=1e-6), \
        "HBM DMA-gather fallback mismatch"

    print("KERNEL_OK")
</pallas_src>

<mosaic_0001>
module attributes {stable_mosaic.version = 11 : i64} {
  func.func @_vmem_onehot_gather_kernel(%arg0: i32, %arg1: memref<8x3xi32, #tpu.memory_space<vmem>>, %arg2: memref<80x16xf32, #tpu.memory_space<vmem>>, %arg3: memref<8x128xf32, #tpu.memory_space<vmem>>) attributes {dimension_semantics = [#tpu.dimension_semantics<parallel>], iteration_bounds = array<i64: 2>, scalar_prefetch = 0 : i64, scratch_operands = 0 : i64, tpu.core_type = #tpu.core_type<tc>, window_params = [{transform_indices = @transform_0, window_bounds = array<i64: 8, 3>}, {pipeline_mode = #tpu.pipeline_mode<synchronous>, transform_indices = @transform_1, window_bounds = array<i64: 80, 16>}, {transform_indices = @transform_2, window_bounds = array<i64: 8, 128>}]} {
    %c0 = arith.constant 0 : index
    %c0_0 = arith.constant 0 : index
    %0 = vector.load %arg1[%c0, %c0_0] : memref<8x3xi32, #tpu.memory_space<vmem>>, vector<8x3xi32>
    %c0_1 = arith.constant 0 : index
    %c0_2 = arith.constant 0 : index
    %1 = vector.load %arg2[%c0_1, %c0_2] : memref<80x16xf32, #tpu.memory_space<vmem>>, vector<80x16xf32>
    %2 = vector.extract_strided_slice %0 {offsets = [0, 0], sizes = [8, 1], strides = [1, 1]} : vector<8x3xi32> to vector<8x1xi32>
    %3 = tpu.iota {dimensions = array<i32: 1>} : vector<8x80xi32>
    %4 = vector.broadcast %2 : vector<8x1xi32> to vector<8x80xi32>
    %5 = arith.cmpi eq, %4, %3 : vector<8x80xi32>
    %6 = arith.extui %5 : vector<8x80xi1> to vector<8x80xi32>
    %7 = arith.sitofp %6 : vector<8x80xi32> to vector<8x80xf32>
    %cst = arith.constant dense<0.000000e+00> : vector<8x16xf32>
    %8 = tpu.matmul %7, %1, %cst {dimension_numbers = #tpu.dot_dimension_numbers<[1], [0], [0], [1], [0, 0, 1, 1], [], []>} : vector<8x80xf32>, vector<80x16xf32>, vector<8x16xf32> -> vector<8x16xf32>
    %9 = vector.extract_strided_slice %0 {offsets = [0, 1], sizes = [8, 1], strides = [1, 1]} : vector<8x3xi32> to vector<8x1xi32>
    %10 = tpu.iota {dimensions = array<i32: 1>} : vector<8x80xi32>
    %11 = vector.broadcast %9 : vector<8x1xi32> to vector<8x80xi32>
    %12 = arith.cmpi eq, %11, %10 : vector<8x80xi32>
    %13 = arith.extui %12 : vector<8x80xi1> to vector<8x80xi32>
    %14 = arith.sitofp %13 : vector<8x80xi32> to vector<8x80xf32>
    %cst_3 = arith.constant dense<0.000000e+00> : vector<8x16xf32>
    %15 = tpu.matmul %14, %1, %cst_3 {dimension_numbers = #tpu.dot_dimension_numbers<[1], [0], [0], [1], [0, 0, 1, 1], [], []>} : vector<8x80xf32>, vector<80x16xf32>, vector<8x16xf32> -> vector<8x16xf32>
    %16 = vector.extract_strided_slice %0 {offsets = [0, 2], sizes = [8, 1], strides = [1, 1]} : vector<8x3xi32> to vector<8x1xi32>
    %17 = tpu.iota {dimensions = array<i32: 1>} : vector<8x80xi32>
    %18 = vector.broadcast %16 : vector<8x1xi32> to vector<8x80xi32>
    %19 = arith.cmpi eq, %18, %17 : vector<8x80xi32>
    %20 = arith.extui %19 : vector<8x80xi1> to vector<8x80xi32>
    %21 = arith.sitofp %20 : vector<8x80xi32> to vector<8x80xf32>
    %cst_4 = arith.constant dense<0.000000e+00> : vector<8x16xf32>
    %22 = tpu.matmul %21, %1, %cst_4 {dimension_numbers = #tpu.dot_dimension_numbers<[1], [0], [0], [1], [0, 0, 1, 1], [], []>} : vector<8x80xf32>, vector<80x16xf32>, vector<8x16xf32> -> vector<8x16xf32>
    %cst_5 = arith.constant 0.000000e+00 : f32
    %23 = vector.broadcast %cst_5 : f32 to vector<8x80xf32>
    %24 = tpu.concatenate %8, %15, %22, %23 in 1 : vector<8x16xf32>, vector<8x16xf32>, vector<8x16xf32>, vector<8x80xf32> -> vector<8x128xf32>
    %c0_6 = arith.constant 0 : index
    %c0_7 = arith.constant 0 : index
    %25 = vector.load %arg3[%c0_6, %c0_7] : memref<8x128xf32, #tpu.memory_space<vmem>>, vector<8x128xf32>
    tpu.vector_store %arg3[%c0_6, %c0_7], %24 {strides = array<i32>} : memref<8x128xf32, #tpu.memory_space<vmem>>, vector<8x128xf32>,
    return
  }
  func.func @transform_0(%arg0: i32) -> (i32, i32) {
    %c0_i32 = arith.constant 0 : i32
    %c0_i32_0 = arith.constant 0 : i32
    return %arg0, %c0_i32 : i32, i32
  }
  func.func @transform_1(%arg0: i32) -> (i32, i32) {
    %c0_i32 = arith.constant 0 : i32
    %c0_i32_0 = arith.constant 0 : i32
    %c0_i32_1 = arith.constant 0 : i32
    return %c0_i32, %c0_i32_0 : i32, i32
  }
  func.func @transform_2(%arg0: i32) -> (i32, i32) {
    %c0_i32 = arith.constant 0 : i32
    %c0_i32_0 = arith.constant 0 : i32
    return %arg0, %c0_i32 : i32, i32
  }
}

</mosaic_0001>

<llo_original>
// kernel: tpu_custom_call.1
$region0: #{tpu_custom_call.1}
  #allocation0 [shape = 'u32[]', space=smem, size = 0x4, offset = 0x4, fixed_abs, tag = 'smem constant byte address 0x4 - core index']
  #allocation1 [shape = 'u32[144,128]{1,0:T(1,128)}', space=vmem, size = 0x12000, scoped, tag = 'internal scratch']
  %s0 = inlined_call_operand.vmem [shape: s32[16,3], index: 0, kind: input, shape index: {}]
  %s1 = inlined_call_operand.vmem [shape: f32[80,16], index: 1, kind: input, shape index: {}]
  %s2 = inlined_call_operand.hbm [shape: f32[16,128], index: 2, kind: output, shape index: {}]
  %s3 = sld [smem:[#allocation0]]
  $region41: #{tpu_custom_call.1} parent=0
    _
  %s5 = ssub.s32 1, %s3
  %s6 = scalar_select 0, %s5, %s3
  $region1: #{tpu_custom_call.1} parent=0
    #allocation2 [shape = 'u8[8192]{0}', space=vmem, size = 0x2000, scoped, tag = 'output window, operand 0']
    #allocation3 [shape = 's32[2]{0}', space=sflag, size = 0x8, scoped, tag = 'scoped memory for tpu_custom_call.1']
    %7 = vsyncpa [#allocation3], 0
    %s8 = scalar_lea.sflag [#allocation3], 1
    %9 = vsyncpa %s8, 0
    loop: start=0, step=1, limit=4
    $region2: #{tpu_custom_call.1} parent=1 // loop_pre_header
      _
    $region3: #{tpu_custom_call.1} parent=1 // loop_header
      %s11 = sphi 0, %s15
      %p12 = scmp.ge.s32.totalorder %s11, 4
      %s21 = sphi 0, %s23
      %s24 = sphi 0, %s21
      %s25 = sphi 0, %s24
      %s41 = sphi 0, %s25
      %s45 = sphi 0, %s45
      %s47 = sphi 0, %s45
      %s48 = sphi 0, %s47
      %s62 = sphi 0, %s48
      %s68 = sphi 0, %s70
      %s71 = sphi 0, %s68
      %s72 = sphi 0, %s71
      %s88 = sphi 0, %s72
    $region4: #{tpu_custom_call.1} parent=1 // loop_header_branch
      %14 = sbr.rel (%p12) target = $region8
    $region5: #{tpu_custom_call.1} parent=1 // loop_body
      %s16 = ssub.s32 %s11, 1
      %s17 = ssub.s32 %s11, 2
      %s18 = sadd.s32 %s11, 1
      %s19 = ssub.s32 %s11, %s18
      %p20 = scmp.eq.s32.totalorder %s19, 0
      %s22 = sadd.s32 %s21, 1
      %s23 = scalar_select %p20, %s21, %s22
      %p26 = pneg %p20
      %p27 = scmp.eq.s32.totalorder %s11, 1
      %p28 = por %p26, %p27
      %p29 = scmp.ne.s32.totalorder %s21, %s24
      %p30 = scmp.eq.s32.totalorder %s11, 0
      %p31 = por %p29, %p30
      %p32 = scmp.ne.s32.totalorder %s21, %s24
      %p33 = scmp.eq.s32.totalorder %s16, 1
      %p34 = por %p32, %p33
      %p35 = scmp.ne.s32.totalorder %s24, %s25
      %p36 = scmp.eq.s32.totalorder %s16, 0
      %p37 = por %p35, %p36
      %p38 = scmp.ne.s32.totalorder %s24, %s25
      %p39 = scmp.eq.s32.totalorder %s17, 1
      %p40 = por %p38, %p39
      %p42 = scmp.ne.s32.totalorder %s25, %s41
      %p43 = scmp.eq.s32.totalorder %s17, 0
      %p44 = por %p42, %p43
      %s46 = sadd.s32 %s45, 1
      %p49 = scmp.eq.s32.totalorder %s11, 1
      %p50 = scmp.ne.s32.totalorder %s45, %s47
      %p51 = scmp.eq.s32.totalorder %s11, 0
      %p52 = por %p50, %p51
      %p53 = scmp.ne.s32.totalorder %s45, %s47
      %p54 = scmp.eq.s32.totalorder %s16, 1
      %p55 = por %p53, %p54
      %p56 = scmp.ne.s32.totalorder %s47, %s48
      %p57 = scmp.eq.s32.totalorder %s16, 0
      %p58 = por %p56, %p57
      %p59 = scmp.ne.s32.totalorder %s47, %s48
      %p60 = scmp.eq.s32.totalorder %s17, 1
      %p61 = por %p59, %p60
      %p63 = scmp.ne.s32.totalorder %s48, %s62
      %p64 = scmp.eq.s32.totalorder %s17, 0
      %p65 = por %p63, %p64
      %s66 = ssub.s32 %s11, %s18
      %p67 = scmp.eq.s32.totalorder %s66, 0
      %s69 = sadd.s32 %s68, 1
      %s70 = scalar_select %p67, %s68, %s69
      %p73 = pneg %p67
      %p74 = scmp.eq.s32.totalorder %s11, 1
      %p75 = por %p73, %p74
      %p76 = scmp.ne.s32.totalorder %s68, %s71
      %p77 = scmp.eq.s32.totalorder %s11, 0
      %p78 = por %p76, %p77
      %p79 = scmp.ne.s32.totalorder %s68, %s71
      %p80 = scmp.eq.s32.totalorder %s16, 1
      %p81 = por %p79, %p80
      %p82 = scmp.ne.s32.totalorder %s71, %s72
      %p83 = scmp.eq.s32.totalorder %s16, 0
      %p84 = por %p82, %p83
      %p85 = scmp.ne.s32.totalorder %s71, %s72
      %p86 = scmp.eq.s32.totalorder %s17, 1
      %p87 = por %p85, %p86
      %p89 = scmp.ne.s32.totalorder %s72, %s88
      %p90 = scmp.eq.s32.totalorder %s17, 0
      %p91 = por %p89, %p90
      %p92 = scmp.le.s32.totalorder 1, %s11
      %p93 = scmp.lt.s32.totalorder %s11, 3
      %p94 = pnand %p92, %p93
      %p95 = pneg %p94
      // Predicated region
      $region9: #{tpu_custom_call.1} parent=5 // pred_check
        _
      $region10: #{tpu_custom_call.1} parent=5 // pred_check_branch
        %97 = sbr.rel (%p94) target = $region12
      $region11: #{tpu_custom_call.1} parent=5 // pred_region
        %s98 = ssub.s32 %s11, 1
        // Predicated region
        $region13: #{tpu_custom_call.1} parent=11 // pred_check
          %p99 = pneg %p58
        $region14: #{tpu_custom_call.1} parent=11 // pred_check_branch
          %101 = sbr.rel (%p99) target = $region16
        $region15: #{tpu_custom_call.1} parent=11 // pred_region
          _
        $region16: #{tpu_custom_call.1} parent=11 // pred_fallthru
          _
      $region12: #{tpu_custom_call.1} parent=5 // pred_fallthru
        _
      %p102 = scmp.lt.s32.totalorder %s11, 2
      // Predicated region
      $region17: #{tpu_custom_call.1} parent=5 // pred_check
        %p103 = pneg %p102
      $region18: #{tpu_custom_call.1} parent=5 // pred_check_branch
        %105 = sbr.rel (%p103) target = $region20
      $region19: #{tpu_custom_call.1} parent=5 // pred_region
        // Predicated region
        $region21: #{tpu_custom_call.1} parent=19 // pred_check
          %p106 = pneg %p31
        $region22: #{tpu_custom_call.1} parent=19 // pred_check_branch
          %108 = sbr.rel (%p106) target = $region24
        $region23: #{tpu_custom_call.1} parent=19 // pred_region
          %p109 = scmp.lt.s32.totalorder %s11, 1
          %s110 = scalar_select %p109, %s11, 1
          %s111 = smul.addr %s110, 8
          %s112 = scalar_lea.vmem %s0, %s111
        $region24: #{tpu_custom_call.1} parent=19 // pred_fallthru
          _
      $region20: #{tpu_custom_call.1} parent=5 // pred_fallthru
        _
      %p113 = scmp.le.s32.totalorder 1, %s11
      %p114 = scmp.lt.s32.totalorder %s11, 3
      %p115 = pnand %p113, %p114
      %p116 = pneg %p115
      // Predicated region
      $region25: #{tpu_custom_call.1} parent=5 // pred_check
        _
      $region26: #{tpu_custom_call.1} parent=5 // pred_check_branch
        %118 = sbr.rel (%p115) target = $region28
      $region27: #{tpu_custom_call.1} parent=5 // pred_region
        %s119 = ssub.s32 %s11, 1
        %p120 = scmp.lt.s32.totalorder %s16, 1
        %s121 = scalar_select %p120, %s16, 1
        %s122 = smul.addr %s121, 8
        %s123 = scalar_lea.vmem %s0, %s122
        %p124 = pneg %p37
        %p125 = pneg %p34
        %p126 = pneg %p58
        %p127 = pneg %p55
        %p128 = pneg %p84
        %p129 = pneg %p81
        %s130 = sand.u32 %s71, 1
        %s131 = scalar_lea.sflag [#allocation3], %s130
        %s132 = sand.u32 %s71, 1
        %s133 = smul.addr %s132, 8
        %s134 = scalar_lea.vmem [#allocation2], %s133
        %p135 = scmp.lt.s32.totalorder %s16, 1
        %s136 = scalar_select %p135, %s16, 1
        %s137 = smul.addr %s136, 8
        %s138 = scalar_lea.vmem %s0, %s137
        %v139 = vld [vmem:[%s138] sm:$0xff]
        %v140 = vld [vmem:[%s1] sm:$0xff]
        %v141 = vld [vmem:[%s1 + $0x8] sm:$0xff]
        %v142 = vld [vmem:[%s1 + $0x10] sm:$0xff]
        %v143 = vld [vmem:[%s1 + $0x18] sm:$0xff]
        %v144 = vld [vmem:[%s1 + $0x20] sm:$0xff]
        %v145 = vld [vmem:[%s1 + $0x28] sm:$0xff]
        %v146 = vld [vmem:[%s1 + $0x30] sm:$0xff]
        %v147 = vld [vmem:[%s1 + $0x38] sm:$0xff]
        %v148 = vld [vmem:[%s1 + $0x40] sm:$0xff]
        %v149 = vld [vmem:[%s1 + $0x48] sm:$0xff]
        %v150 = vlaneseq
        %v151 = vand.u32 %v150, 127
        %152 = vset.pattern.permute.xlu0 0
        %153 = vperm.xlu0 %152, %v139
        %v154 = vpop.permute.xlu0 %153
        %vm155 = vcmp.eq.s32.totalorder %v154, %v151
        %v156 = vsel %vm155, 1, 0
        %v157 = vcvt.s32.f32 %v156
        %vm158 = vcmask 654336
        %v160 = vsel %vm158, %v157, 0
        %162 = vmatprep.subr.mxu0 0.0
        %163 = vmatpush1.msra.mxu0 0.0
        %164 = vmatprep.subr.mxu0 0.0
        %165 = vmatpush1.msra.mxu0 0.0
        %166 = vmatprep.subr.mxu0 0.0
        %167 = vmatpush1.msra.mxu0 0.0
        %168 = vmatprep.subr.mxu0 0.0
        %169 = vmatpush1.msra.mxu0 0.0
        %170 = vmatprep.subr.mxu0 0.0
        %171 = vmatpush1.msra.mxu0 0.0
        %172 = vmatprep.subr.mxu0 0.0
        %173 = vmatpush1.msra.mxu0 0.0
        %174 = vmatprep.subr.mxu0 0.0
        %175 = vmatpush1.msra.mxu0 %v149
        %176 = vmatprep.subr.mxu0 0.0
        %177 = vmatpush1.msra.mxu0 %v148
        %178 = vmatprep.subr.mxu0 0.0
        %179 = vmatpush1.msra.mxu0 %v147
        %180 = vmatprep.subr.mxu0 0.0
        %181 = vmatpush1.msra.mxu0 %v146
        %182 = vmatprep.subr.mxu0 0.0
        %183 = vmatpush1.msra.mxu0 %v145
        %184 = vmatprep.subr.mxu0 0.0
        %185 = vmatpush1.msra.mxu0 %v144
        %186 = vmatprep.subr.mxu0 0.0
        %187 = vmatpush1.msra.mxu0 %v143
        %188 = vmatprep.subr.mxu0 0.0
        %189 = vmatpush1.msra.mxu0 %v142
        %190 = vmatprep.subr.mxu0 0.0
        %191 = vmatpush1.msra.mxu0 %v141
        %192 = vmatprep.subr.mxu0 0.0
        %193 = vmatpush1.msra.mxu0 %v140
        %194 = vmatprep.subr.mxu0 0.0
        %195 = vmatpush2.msra.mxu0 0.0
        %196 = vmatprep.subr.mxu0 0.0
        %197 = vmatpush2.msra.mxu0 0.0
        %198 = vmatprep.subr.mxu0 0.0
        %199 = vmatpush2.msra.mxu0 0.0
        %200 = vmatprep.subr.mxu0 0.0
        %201 = vmatpush2.msra.mxu0 0.0
        %202 = vmatprep.subr.mxu0 0.0
        %203 = vmatpush2.msra.mxu0 0.0
        %204 = vmatprep.subr.mxu0 0.0
        %205 = vmatpush2.msra.mxu0 0.0
        %206 = vmatprep.subr.mxu0 0.0
        %207 = vmatpush2.msra.mxu0 0.0
        %208 = vmatprep.subr.mxu0 0.0
        %209 = vmatpush2.msra.mxu0 0.0
        %210 = vmatprep.subr.mxu0 0.0
        %211 = vmatpush2.msra.mxu0 0.0
        %212 = vmatprep.subr.mxu0 0.0
        %213 = vmatpush2.msra.mxu0 0.0
        %214 = vmatprep.subr.mxu0 0.0
        %215 = vmatpush2.msra.mxu0 0.0
        %216 = vmatprep.subr.mxu0 0.0
        %217 = vmatpush2.msra.mxu0 0.0
        %218 = vmatprep.subr.mxu0 0.0
        %219 = vmatpush2.msra.mxu0 0.0
        %220 = vmatprep.subr.mxu0 0.0
        %221 = vmatpush2.msra.mxu0 0.0
        %222 = vmatprep.subr.mxu0 0.0
        %223 = vmatpush2.msra.mxu0 0.0
        %224 = vmatprep.subr.mxu0 0.0
        %225 = vmatpush2.msra.mxu0 0.0
        %226 = vmatprep.mubr.f32.mxu0 0.0
        %227 = vmatmul.mubr.f32.gmra.mxu0 %v160
        %v228 = vpop.f32.mrf.mxu0
        %v229 = vadd.f32 0.0, %v228
        %v230 = vpop.f32.mrf.mxu0
        %231 = vdwg.mxu0
        %232 = vset.pattern.permute.xlu0 1
        %233 = vperm.xlu0 %232, %v139
        %v234 = vpop.permute.xlu0 %233
        %vm235 = vcmp.eq.s32.totalorder %v234, %v151
        %v236 = vsel %vm235, 1, 0
        %v237 = vcvt.s32.f32 %v236
        %v239 = vsel %vm158, %v237, 0
        %241 = vmatprep.subr.mxu0 0.0
        %242 = vmatpush1.msra.mxu0 0.0
        %243 = vmatprep.subr.mxu0 0.0
        %244 = vmatpush1.msra.mxu0 0.0
        %245 = vmatprep.subr.mxu0 0.0
        %246 = vmatpush1.msra.mxu0 0.0
        %247 = vmatprep.subr.mxu0 0.0
        %248 = vmatpush1.msra.mxu0 0.0
        %249 = vmatprep.subr.mxu0 0.0
        %250 = vmatpush1.msra.mxu0 0.0
        %251 = vmatprep.subr.mxu0 0.0
        %252 = vmatpush1.msra.mxu0 0.0
        %253 = vmatprep.subr.mxu0 0.0
        %254 = vmatpush1.msra.mxu0 %v149
        %255 = vmatprep.subr.mxu0 0.0
        %256 = vmatpush1.msra.mxu0 %v148
        %257 = vmatprep.subr.mxu0 0.0
        %258 = vmatpush1.msra.mxu0 %v147
        %259 = vmatprep.subr.mxu0 0.0
        %260 = vmatpush1.msra.mxu0 %v146
        %261 = vmatprep.subr.mxu0 0.0
        %262 = vmatpush1.msra.mxu0 %v145
        %263 = vmatprep.subr.mxu0 0.0
        %264 = vmatpush1.msra.mxu0 %v144
        %265 = vmatprep.subr.mxu0 0.0
        %266 = vmatpush1.msra.mxu0 %v143
        %267 = vmatprep.subr.mxu0 0.0
        %268 = vmatpush1.msra.mxu0 %v142
        %269 = vmatprep.subr.mxu0 0.0
        %270 = vmatpush1.msra.mxu0 %v141
        %271 = vmatprep.subr.mxu0 0.0
        %272 = vmatpush1.msra.mxu0 %v140
        %273 = vmatprep.subr.mxu0 0.0
        %274 = vmatpush2.msra.mxu0 0.0
        %275 = vmatprep.subr.mxu0 0.0
        %276 = vmatpush2.msra.mxu0 0.0
        %277 = vmatprep.subr.mxu0 0.0
        %278 = vmatpush2.msra.mxu0 0.0
        %279 = vmatprep.subr.mxu0 0.0
        %280 = vmatpush2.msra.mxu0 0.0
        %281 = vmatprep.subr.mxu0 0.0
        %282 = vmatpush2.msra.mxu0 0.0
        %283 = vmatprep.subr.mxu0 0.0
        %284 = vmatpush2.msra.mxu0 0.0
        %285 = vmatprep.subr.mxu0 0.0
        %286 = vmatpush2.msra.mxu0 0.0
        %287 = vmatprep.subr.mxu0 0.0
        %288 = vmatpush2.msra.mxu0 0.0
        %289 = vmatprep.subr.mxu0 0.0
        %290 = vmatpush2.msra.mxu0 0.0
        %291 = vmatprep.subr.mxu0 0.0
        %292 = vmatpush2.msra.mxu0 0.0
        %293 = vmatprep.subr.mxu0 0.0
        %294 = vmatpush2.msra.mxu0 0.0
        %295 = vmatprep.subr.mxu0 0.0
        %296 = vmatpush2.msra.mxu0 0.0
        %297 = vmatprep.subr.mxu0 0.0
        %298 = vmatpush2.msra.mxu0 0.0
        %299 = vmatprep.subr.mxu0 0.0
        %300 = vmatpush2.msra.mxu0 0.0
        %301 = vmatprep.subr.mxu0 0.0
        %302 = vmatpush2.msra.mxu0 0.0
        %303 = vmatprep.subr.mxu0 0.0
        %304 = vmatpush2.msra.mxu0 0.0
        %305 = vmatprep.mubr.f32.mxu0 0.0
        %306 = vmatmul.mubr.f32.gmra.mxu0 %v239
        %v307 = vpop.f32.mrf.mxu0
        %v308 = vadd.f32 0.0, %v307
        %v309 = vpop.f32.mrf.mxu0
        %310 = vdwg.mxu0
        %311 = vset.pattern.permute.xlu0 2
        %312 = vperm.xlu0 %311, %v139
        %v313 = vpop.permute.xlu0 %312
        %vm314 = vcmp.eq.s32.totalorder %v313, %v151
        %v315 = vsel %vm314, 1, 0
        %v316 = vcvt.s32.f32 %v315
        %v318 = vsel %vm158, %v316, 0
        %320 = vmatprep.subr.mxu0 0.0
        %321 = vmatpush1.msra.mxu0 0.0
        %322 = vmatprep.subr.mxu0 0.0
        %323 = vmatpush1.msra.mxu0 0.0
        %324 = vmatprep.subr.mxu0 0.0
        %325 = vmatpush1.msra.mxu0 0.0
        %326 = vmatprep.subr.mxu0 0.0
        %327 = vmatpush1.msra.mxu0 0.0
        %328 = vmatprep.subr.mxu0 0.0
        %329 = vmatpush1.msra.mxu0 0.0
        %330 = vmatprep.subr.mxu0 0.0
        %331 = vmatpush1.msra.mxu0 0.0
        %332 = vmatprep.subr.mxu0 0.0
        %333 = vmatpush1.msra.mxu0 %v149
        %334 = vmatprep.subr.mxu0 0.0
        %335 = vmatpush1.msra.mxu0 %v148
        %336 = vmatprep.subr.mxu0 0.0
        %337 = vmatpush1.msra.mxu0 %v147
        %338 = vmatprep.subr.mxu0 0.0
        %339 = vmatpush1.msra.mxu0 %v146
        %340 = vmatprep.subr.mxu0 0.0
        %341 = vmatpush1.msra.mxu0 %v145
        %342 = vmatprep.subr.mxu0 0.0
        %343 = vmatpush1.msra.mxu0 %v144
        %344 = vmatprep.subr.mxu0 0.0
        %345 = vmatpush1.msra.mxu0 %v143
        %346 = vmatprep.subr.mxu0 0.0
        %347 = vmatpush1.msra.mxu0 %v142
        %348 = vmatprep.subr.mxu0 0.0
        %349 = vmatpush1.msra.mxu0 %v141
        %350 = vmatprep.subr.mxu0 0.0
        %351 = vmatpush1.msra.mxu0 %v140
        %352 = vmatprep.subr.mxu0 0.0
        %353 = vmatpush2.msra.mxu0 0.0
        %354 = vmatprep.subr.mxu0 0.0
        %355 = vmatpush2.msra.mxu0 0.0
        %356 = vmatprep.subr.mxu0 0.0
        %357 = vmatpush2.msra.mxu0 0.0
        %358 = vmatprep.subr.mxu0 0.0
        %359 = vmatpush2.msra.mxu0 0.0
        %360 = vmatprep.subr.mxu0 0.0
        %361 = vmatpush2.msra.mxu0 0.0
        %362 = vmatprep.subr.mxu0 0.0
        %363 = vmatpush2.msra.mxu0 0.0
        %364 = vmatprep.subr.mxu0 0.0
        %365 = vmatpush2.msra.mxu0 0.0
        %366 = vmatprep.subr.mxu0 0.0
        %367 = vmatpush2.msra.mxu0 0.0
        %368 = vmatprep.subr.mxu0 0.0
        %369 = vmatpush2.msra.mxu0 0.0
        %370 = vmatprep.subr.mxu0 0.0
        %371 = vmatpush2.msra.mxu0 0.0
        %372 = vmatprep.subr.mxu0 0.0
        %373 = vmatpush2.msra.mxu0 0.0
        %374 = vmatprep.subr.mxu0 0.0
        %375 = vmatpush2.msra.mxu0 0.0
        %376 = vmatprep.subr.mxu0 0.0
        %377 = vmatpush2.msra.mxu0 0.0
        %378 = vmatprep.subr.mxu0 0.0
        %379 = vmatpush2.msra.mxu0 0.0
        %380 = vmatprep.subr.mxu0 0.0
        %381 = vmatpush2.msra.mxu0 0.0
        %382 = vmatprep.subr.mxu0 0.0
        %383 = vmatpush2.msra.mxu0 0.0
        %384 = vmatprep.mubr.f32.mxu0 0.0
        %385 = vmatmul.mubr.f32.gmra.mxu0 %v318
        %v386 = vpop.f32.mrf.mxu0
        %v387 = vadd.f32 0.0, %v386
        %v388 = vpop.f32.mrf.mxu0
        %389 = vdwg.mxu0
        %391 = vrot.lane.b32.xlu0 %v308, 16
        %v392 = vpop.permute.xlu0 %391
        %395 = vrot.lane.b32.xlu0 %v387, 32
        %v396 = vpop.permute.xlu0 %395
        %vm398 = vcmask 130048
        %v399 = vsel %vm398, %v229, %v392
        %vm400 = vcmask 261120
        %v401 = vsel %vm400, %v399, %v396
        %vm402 = vcmask 392192
        %v403 = vsel %vm402, %v401, 0.0
        %404 = vst [vmem:[%s134] sm:$0xff] %v403
        %s405 = sand.u32 %s71, 1
        %s406 = scalar_lea.sflag [#allocation3], %s405
        %s407 = sand.u32 %s71, 1
        %s408 = smul.addr %s407, 8
        %s409 = scalar_lea.vmem [#allocation2], %s408
        // Predicated region
        $region29: #{tpu_custom_call.1} parent=27 // pred_check
          %p410 = pneg %p81
        $region30: #{tpu_custom_call.1} parent=27 // pred_check_branch
          %412 = sbr.rel (%p410) target = $region32
        $region31: #{tpu_custom_call.1} parent=27 // pred_region
          %s414 = ssub.s32 128, 128
          %415 = vsyncadd %s406, %s414
          %s416 = smul.addr %s16, 128
          %s417 = scalar_lea.hbm %s2, %s416
          %s419 = sshll.u32 %s409, 4
          %s420 = int_to_ptr.vmem [resolvable:$true] %s419
          %422 = dma.vmem_to_hbm [thread:$0]  %s420, 128, %s417, %s406
        $region32: #{tpu_custom_call.1} parent=27 // pred_fallthru
          _
      $region28: #{tpu_custom_call.1} parent=5 // pred_fallthru
        _
      %p423 = scmp.le.s32.totalorder 2, %s11
      // Predicated region
      $region33: #{tpu_custom_call.1} parent=5 // pred_check
        %p424 = pneg %p423
      $region34: #{tpu_custom_call.1} parent=5 // pred_check_branch
        %426 = sbr.rel (%p424) target = $region36
      $region35: #{tpu_custom_call.1} parent=5 // pred_region
        %s427 = ssub.s32 %s11, 2
        // Predicated region
        $region37: #{tpu_custom_call.1} parent=35 // pred_check
          %p428 = pneg %p87
        $region38: #{tpu_custom_call.1} parent=35 // pred_check_branch
          %430 = sbr.rel (%p428) target = $region40
        $region39: #{tpu_custom_call.1} parent=35 // pred_region
          %s431 = sand.u32 %s72, 1
          %s432 = scalar_lea.sflag [#allocation3], %s431
          %s433 = sand.u32 %s72, 1
          %s434 = smul.addr %s433, 8
          %s435 = scalar_lea.vmem [#allocation2], %s434
          %436 = dma.done %s432, 128
        $region40: #{tpu_custom_call.1} parent=35 // pred_fallthru
          _
      $region36: #{tpu_custom_call.1} parent=5 // pred_fallthru
        _
    $region6: #{tpu_custom_call.1} parent=1 // loop_footer
      %s15 = sadd.s32 1, %s11
    $region7: #{tpu_custom_call.1} parent=1 // loop_footer_branch
      %10 = sbr.rel target = $region3
    $region8: #{tpu_custom_call.1} parent=1 // loop_exit
      _
    %437 = vsyncpa [#allocation3], 1
    %s438 = scalar_lea.sflag [#allocation3], 1
    %439 = vsyncpa %s438, 1

</llo_original>
